<compile_context>
chip_gen: v5e
topology: v5e:2x2
jax: 0.10.0
libtpu: 0.0.40
codegen_flags: <defaults>
</compile_context>

<pallas_src>
import jax
import jax.numpy as jnp
from jax import lax
from jax.experimental import pallas as pl
from jax.experimental.pallas import tpu as pltpu

# ----------------------------- problem sizes ------------------------------
N = 5            # nodes (from X in the reference script)
INPUT_DIM = 3    # feature dim of X
HIDDEN_DIM = 8
OUTPUT_DIM = 2

LANES = 128      # lane width of the packed parameter slab / output

# packed-parameter layout (sublane-aligned offsets inside one (32, 128) slab)
W1_OFF = 0                      # rows [0,  8) : W1 (3, 8)  zero-padded to (8, 128)
W2_OFF = 8                      # rows [8, 16) : W2 (8, 2)  zero-padded to (8, 128)
B1_OFF = 16                     # row  16      : b1 (8,)    zero-padded to (1, 128)
B2_OFF = 24                     # row  24      : b2 (2,)    zero-padded to (1, 128)
PROWS = 32                      # 32 x 128 x f32 = 16 KiB

_HP = jax.lax.Precision.HIGHEST


# ------------------------------ Pallas kernel ------------------------------
def gcn2_kernel(a_ref, x_ref, p_ref, o_ref):
    """Whole 2-layer GCN forward in VMEM (single program, 3 tiny input DMAs)."""
    a = a_ref[...]                                            # (N, N)
    w1 = p_ref[W1_OFF:W1_OFF + INPUT_DIM, :]                  # (3, 128)
    w2 = p_ref[W2_OFF:W2_OFF + HIDDEN_DIM, :]                 # (8, 128)
    b1 = p_ref[B1_OFF:B1_OFF + 1, :]                          # (1, 128)
    b2 = p_ref[B2_OFF:B2_OFF + 1, :]                          # (1, 128)

    # layer 1: relu(A_hat @ (X W1) + b1)          (K = INPUT_DIM = 3)
    xw1 = jnp.dot(x_ref[...], w1,
                  preferred_element_type=jnp.float32, precision=_HP)   # (N, 128)
    h1 = jnp.maximum(
        jnp.dot(a, xw1, preferred_element_type=jnp.float32, precision=_HP) + b1,
        0.0)
    # columns >= HIDDEN_DIM of h1 are exactly zero (zero-padded W1/b1); only
    # the first HIDDEN_DIM lanes feed layer 2  (K = HIDDEN_DIM = 8).
    hw2 = jnp.dot(h1[:, :HIDDEN_DIM], w2,
                  preferred_element_type=jnp.float32, precision=_HP)   # (N, 128)
    o_ref[...] = (jnp.dot(a, hw2,
                          preferred_element_type=jnp.float32, precision=_HP)
                  + b2)


# --------------------------- parameter packing -----------------------------
def _pad2(m, rows, cols):
    m = jnp.asarray(m, jnp.float32)
    return lax.pad(m, jnp.float32(0),
                   ((0, rows - m.shape[0], 0), (0, cols - m.shape[1], 0)))


def pack_params(w1, b1, w2, b2):
    """Pad + pack all parameters into one (32, 128) slab (done once at init)."""
    w1_p = _pad2(w1, 8, LANES)               # rows  0.. 7
    w2_p = _pad2(w2, 8, LANES)               # rows  8..15
    b1_p = _pad2(b1[None, :], 8, LANES)      # rows 16..23 (only row 16 used)
    b2_p = _pad2(b2[None, :], 8, LANES)      # rows 24..31 (only row 24 used)
    return jnp.concatenate([w1_p, w2_p, b1_p, b2_p], axis=0)   # (32, 128)


# ------------------------------ forward call --------------------------------
@jax.jit
def gnn_forward(a_hat, x, params_packed):
    """Runs the kernel on unpadded A_hat / X, slices the valid output."""
    vmem = pltpu.MemorySpace.VMEM
    out_p = pl.pallas_call(
        gcn2_kernel,
        out_shape=jax.ShapeDtypeStruct((N, LANES), jnp.float32),
        in_specs=[pl.BlockSpec(memory_space=vmem)] * 3,
        out_specs=pl.BlockSpec(memory_space=vmem),
    )(a_hat.astype(jnp.float32), x.astype(jnp.float32), params_packed)
    return out_p[:, :OUTPUT_DIM]


# --------------------------- graph preprocessing ---------------------------
def build_normalized_adjacency(edge_index, num_nodes):
    """Dense A_hat = D^{-1/2} (A + I) D^{-1/2}; A[dst, src] = 1 per edge.

    Note: uses .set (not .add) + unconditional self-loops; matches PyG GCNConv
    for graphs without duplicate edges or explicit self-loops (true here).
    """
    src = edge_index[0]
    dst = edge_index[1]
    adj = jnp.zeros((num_nodes, num_nodes), jnp.float32)
    adj = adj.at[dst, src].set(1.0)
    adj = adj + jnp.eye(num_nodes, dtype=jnp.float32)
    deg = jnp.sum(adj, axis=1)
    d_inv_sqrt = jnp.where(deg > 0, 1.0 / jnp.sqrt(deg), 0.0)
    return d_inv_sqrt[:, None] * adj * d_inv_sqrt[None, :]


# ------------------------------ pure-JAX ref -------------------------------
def gnn_reference(a_hat, x, w1, b1, w2, b2):
    h = jnp.dot(a_hat, jnp.dot(x, w1, precision=_HP), precision=_HP) + b1[None, :]
    h = jnp.maximum(h, 0.0)
    return jnp.dot(a_hat, jnp.dot(h, w2, precision=_HP), precision=_HP) + b2[None, :]


if __name__ == "__main__":
    # node features and edges from the reference script
    x = jnp.array([[1, 0, 1],
                   [0, 1, 1],
                   [0, 1, 0],
                   [1, 0, 0],
                   [1, 1, 0]], dtype=jnp.float32)
    edge_index = jnp.array([[0, 1, 1, 2, 2, 3, 3, 4],
                            [1, 0, 2, 1, 3, 2, 4, 3]], dtype=jnp.int32)

    # deterministic parameter init (Glorot-style for weights, zero bias)
    key = jax.random.PRNGKey(0)
    k1, k2 = jax.random.split(key)
    s1 = (6.0 / (INPUT_DIM + HIDDEN_DIM)) ** 0.5
    s2 = (6.0 / (HIDDEN_DIM + OUTPUT_DIM)) ** 0.5
    w1 = jax.random.uniform(k1, (INPUT_DIM, HIDDEN_DIM), jnp.float32, -s1, s1)
    b1 = jnp.zeros((HIDDEN_DIM,), jnp.float32)
    w2 = jax.random.uniform(k2, (HIDDEN_DIM, OUTPUT_DIM), jnp.float32, -s2, s2)
    b2 = jnp.zeros((OUTPUT_DIM,), jnp.float32)

    a_hat = build_normalized_adjacency(edge_index, N)

    # pad + pack parameters ONCE (hoisted out of the per-call path)
    params_packed = jax.block_until_ready(pack_params(w1, b1, w2, b2))

    out = gnn_forward(a_hat, x, params_packed)
    jax.block_until_ready(out)

    ref = gnn_reference(a_hat, x, w1, b1, w2, b2)
    assert out.shape == (N, OUTPUT_DIM)
    assert jnp.allclose(out, ref, atol=1e-5, rtol=1e-5)

    print("KERNEL_OK")
</pallas_src>

<mosaic_0001>
module attributes {stable_mosaic.version = 11 : i64} {
  func.func @gcn2_kernel(%arg0: memref<5x5xf32, #tpu.memory_space<vmem>>, %arg1: memref<5x3xf32, #tpu.memory_space<vmem>>, %arg2: memref<32x128xf32, #tpu.memory_space<vmem>>, %arg3: memref<5x128xf32, #tpu.memory_space<vmem>>) attributes {dimension_semantics = [], scalar_prefetch = 0 : i64, scratch_operands = 0 : i64, tpu.core_type = #tpu.core_type<tc>} {
    %c0 = arith.constant 0 : index
    %c0_0 = arith.constant 0 : index
    %0 = vector.load %arg0[%c0, %c0_0] : memref<5x5xf32, #tpu.memory_space<vmem>>, vector<5x5xf32>
    %c0_1 = arith.constant 0 : index
    %c0_2 = arith.constant 0 : index
    %1 = vector.load %arg2[%c0_1, %c0_2] : memref<32x128xf32, #tpu.memory_space<vmem>>, vector<3x128xf32>
    %c8 = arith.constant 8 : index
    %c0_3 = arith.constant 0 : index
    %2 = vector.load %arg2[%c8, %c0_3] : memref<32x128xf32, #tpu.memory_space<vmem>>, vector<8x128xf32>
    %c16 = arith.constant 16 : index
    %c0_4 = arith.constant 0 : index
    %3 = vector.load %arg2[%c16, %c0_4] : memref<32x128xf32, #tpu.memory_space<vmem>>, vector<1x128xf32>
    %c24 = arith.constant 24 : index
    %c0_5 = arith.constant 0 : index
    %4 = vector.load %arg2[%c24, %c0_5] : memref<32x128xf32, #tpu.memory_space<vmem>>, vector<1x128xf32>
    %c0_6 = arith.constant 0 : index
    %c0_7 = arith.constant 0 : index
    %5 = vector.load %arg1[%c0_6, %c0_7] : memref<5x3xf32, #tpu.memory_space<vmem>>, vector<5x3xf32>
    %cst = arith.constant dense<0.000000e+00> : vector<5x128xf32>
    %6 = tpu.matmul %5, %1, %cst {dimension_numbers = #tpu.dot_dimension_numbers<[1], [0], [0], [1], [0, 0, 1, 1], [], []>, precision = #tpu.contract_precision<fp32>} : vector<5x3xf32>, vector<3x128xf32>, vector<5x128xf32> -> vector<5x128xf32>
    %cst_8 = arith.constant dense<0.000000e+00> : vector<5x128xf32>
    %7 = tpu.matmul %0, %6, %cst_8 {dimension_numbers = #tpu.dot_dimension_numbers<[1], [0], [0], [1], [0, 0, 1, 1], [], []>, precision = #tpu.contract_precision<fp32>} : vector<5x5xf32>, vector<5x128xf32>, vector<5x128xf32> -> vector<5x128xf32>
    %8 = vector.broadcast %3 : vector<1x128xf32> to vector<5x128xf32>
    %9 = arith.addf %7, %8 : vector<5x128xf32>
    %cst_9 = arith.constant 0.000000e+00 : f32
    %10 = vector.broadcast %cst_9 : f32 to vector<5x128xf32>
    %11 = arith.maximumf %9, %10 : vector<5x128xf32>
    %12 = vector.extract_strided_slice %11 {offsets = [0, 0], sizes = [5, 8], strides = [1, 1]} : vector<5x128xf32> to vector<5x8xf32>
    %cst_10 = arith.constant dense<0.000000e+00> : vector<5x128xf32>
    %13 = tpu.matmul %12, %2, %cst_10 {dimension_numbers = #tpu.dot_dimension_numbers<[1], [0], [0], [1], [0, 0, 1, 1], [], []>, precision = #tpu.contract_precision<fp32>} : vector<5x8xf32>, vector<8x128xf32>, vector<5x128xf32> -> vector<5x128xf32>
    %cst_11 = arith.constant dense<0.000000e+00> : vector<5x128xf32>
    %14 = tpu.matmul %0, %13, %cst_11 {dimension_numbers = #tpu.dot_dimension_numbers<[1], [0], [0], [1], [0, 0, 1, 1], [], []>, precision = #tpu.contract_precision<fp32>} : vector<5x5xf32>, vector<5x128xf32>, vector<5x128xf32> -> vector<5x128xf32>
    %15 = vector.broadcast %4 : vector<1x128xf32> to vector<5x128xf32>
    %16 = arith.addf %14, %15 : vector<5x128xf32>
    %c0_12 = arith.constant 0 : index
    %c0_13 = arith.constant 0 : index
    %17 = vector.load %arg3[%c0_12, %c0_13] : memref<5x128xf32, #tpu.memory_space<vmem>>, vector<5x128xf32>
    tpu.vector_store %arg3[%c0_12, %c0_13], %16 {strides = array<i32>} : memref<5x128xf32, #tpu.memory_space<vmem>>, vector<5x128xf32>,
    return
  }
}

</mosaic_0001>

<llo_original>
// kernel: gnn_forward.1
$region0: #{gnn_forward.1}
  #allocation0 [shape = 'u32[]', space=smem, size = 0x4, offset = 0x4, fixed_abs, tag = 'smem constant byte address 0x4 - core index']
  #allocation1 [shape = 'u32[72,128]{1,0:T(1,128)}', space=vmem, size = 0x9000, scoped, tag = 'internal scratch']
  %s0 = inlined_call_operand.vmem [shape: f32[5,5], index: 0, kind: input, shape index: {}]
  %s1 = inlined_call_operand.vmem [shape: f32[5,3], index: 1, kind: input, shape index: {}]
  %s2 = inlined_call_operand.hbm [shape: f32[32,128], index: 2, kind: input, shape index: {}]
  %s3 = inlined_call_operand.vmem [shape: f32[5,128], index: 3, kind: output, shape index: {}]
  %s4 = sld [smem:[#allocation0]]
  $region26: #{gnn_forward.1} parent=0
    _
  %s6 = ssub.s32 1, %s4
  %s7 = scalar_select 0, %s6, %s4
  $region1: #{gnn_forward.1} parent=0
    #allocation2 [shape = 'u8[16384]{0}', space=vmem, size = 0x4000, scoped, tag = 'input window, operand 2, single buffered']
    #allocation3 [shape = 's32[1]{0}', space=sflag, size = 0x4, scoped, tag = 'scoped memory for gnn_forward.1']
    %8 = vsyncpa [#allocation3], 0
    // Predicated region
    $region2: #{gnn_forward.1} parent=1 // pred_check
      _
    $region3: #{gnn_forward.1} parent=1 // pred_check_branch
      %10 = sbr.rel (0) target = $region5
    $region4: #{gnn_forward.1} parent=1 // pred_region
      _
    $region5: #{gnn_forward.1} parent=1 // pred_fallthru
      _
    // Predicated region
    $region6: #{gnn_forward.1} parent=1 // pred_check
      _
    $region7: #{gnn_forward.1} parent=1 // pred_check_branch
      %12 = sbr.rel (0) target = $region9
    $region8: #{gnn_forward.1} parent=1 // pred_region
      _
    $region9: #{gnn_forward.1} parent=1 // pred_fallthru
      _
    // Predicated region
    $region10: #{gnn_forward.1} parent=1 // pred_check
      _
    $region11: #{gnn_forward.1} parent=1 // pred_check_branch
      %14 = sbr.rel (0) target = $region13
    $region12: #{gnn_forward.1} parent=1 // pred_region
      %16 = vsyncadd [#allocation3], 0
      %s17 = sshll.u32 %s2, 4
      %s18 = int_to_ptr.hbm [resolvable:$true] %s17
      %s19 = sshll.u32 [#allocation2], 4
      %s20 = int_to_ptr.vmem [resolvable:$true] %s19
      %25 = dma.hbm_to_vmem [thread:$0]  %s18, 512, %s20, [#allocation3], 128, 128, 8
    $region13: #{gnn_forward.1} parent=1 // pred_fallthru
      _
    // Predicated region
    $region14: #{gnn_forward.1} parent=1 // pred_check
      _
    $region15: #{gnn_forward.1} parent=1 // pred_check_branch
      %27 = sbr.rel (0) target = $region17
    $region16: #{gnn_forward.1} parent=1 // pred_region
      %29 = dma.done [#allocation3], 512
    $region17: #{gnn_forward.1} parent=1 // pred_fallthru
      _
    %v30 = vld [vmem:[%s0] sm:$0x1f]
    %v31 = vld [vmem:[#allocation2] sm:$0x7]
    %v32 = vld [vmem:[#allocation2 + $0x8] sm:$0xff]
    %v33 = vld [vmem:[#allocation2 + $0x10] sm:$0x1]
    %v34 = vld [vmem:[#allocation2 + $0x18] sm:$0x1]
    %v35 = vld [vmem:[%s1] sm:$0x1f]
    %vm36 = vcmask 23552
    %v38 = vsel %vm36, %v35, 0
    %vm40 = vcmask 1042432
    %v42 = vsel %vm40, %v31, 0
    %44 = vmatpush.msra.mxu0 0.0
    %45 = vmatpush.msra.mxu0 0.0
    %46 = vmatpush.msra.mxu0 0.0
    %47 = vmatpush.msra.mxu0 0.0
    %48 = vmatpush.msra.mxu0 0.0
    %49 = vmatpush.msra.mxu0 0.0
    %50 = vmatpush.msra.mxu0 0.0
    %51 = vmatpush.msra.mxu0 0.0
    %52 = vmatpush.msra.mxu0 0.0
    %53 = vmatpush.msra.mxu0 0.0
    %54 = vmatpush.msra.mxu0 0.0
    %55 = vmatpush.msra.mxu0 0.0
    %56 = vmatpush.msra.mxu0 0.0
    %57 = vmatpush.msra.mxu0 0.0
    %58 = vmatpush.msra.mxu0 0.0
    %v59 = vand.u32 %v42, 4294901760
    %60 = vmatpush.msra.mxu0 %v59
    %v61 = vand.u32 %v38, 4294901760
    %v62 = vsub.f32 %v38, %v61
    %v63 = vand.u32 %v62, 4294901760
    %v64 = vsub.f32 %v62, %v63
    %v65 = vand.u32 %v64, 4294901760
    %66 = vmatmul.f32.gmra.mxu0 %v65
    %v67 = vpop.f32.mrf.mxu0
    %v68 = vadd.f32 0.0, %v67
    %69 = vdwg.mxu0
    %70 = vmatpush.msra.mxu0 0.0
    %71 = vmatpush.msra.mxu0 0.0
    %72 = vmatpush.msra.mxu0 0.0
    %73 = vmatpush.msra.mxu0 0.0
    %74 = vmatpush.msra.mxu0 0.0
    %75 = vmatpush.msra.mxu0 0.0
    %76 = vmatpush.msra.mxu0 0.0
    %77 = vmatpush.msra.mxu0 0.0
    %78 = vmatpush.msra.mxu0 0.0
    %79 = vmatpush.msra.mxu0 0.0
    %80 = vmatpush.msra.mxu0 0.0
    %81 = vmatpush.msra.mxu0 0.0
    %82 = vmatpush.msra.mxu0 0.0
    %83 = vmatpush.msra.mxu0 0.0
    %84 = vmatpush.msra.mxu0 0.0
    %v85 = vand.u32 %v42, 4294901760
    %v86 = vsub.f32 %v42, %v85
    %v87 = vand.u32 %v86, 4294901760
    %v88 = vsub.f32 %v86, %v87
    %v89 = vand.u32 %v88, 4294901760
    %90 = vmatpush.msra.mxu0 %v89
    %v91 = vand.u32 %v38, 4294901760
    %92 = vmatmul.f32.gmra.mxu0 %v91
    %v93 = vpop.f32.mrf.mxu0
    %v94 = vadd.f32 %v68, %v93
    %95 = vdwg.mxu0
    %96 = vmatpush.msra.mxu0 0.0
    %97 = vmatpush.msra.mxu0 0.0
    %98 = vmatpush.msra.mxu0 0.0
    %99 = vmatpush.msra.mxu0 0.0
    %100 = vmatpush.msra.mxu0 0.0
    %101 = vmatpush.msra.mxu0 0.0
    %102 = vmatpush.msra.mxu0 0.0
    %103 = vmatpush.msra.mxu0 0.0
    %104 = vmatpush.msra.mxu0 0.0
    %105 = vmatpush.msra.mxu0 0.0
    %106 = vmatpush.msra.mxu0 0.0
    %107 = vmatpush.msra.mxu0 0.0
    %108 = vmatpush.msra.mxu0 0.0
    %109 = vmatpush.msra.mxu0 0.0
    %110 = vmatpush.msra.mxu0 0.0
    %v111 = vand.u32 %v42, 4294901760
    %v112 = vsub.f32 %v42, %v111
    %113 = vmatpush.msra.mxu0 %v112
    %v114 = vand.u32 %v38, 4294901760
    %v115 = vsub.f32 %v38, %v114
    %116 = vmatmul.f32.gmra.mxu0 %v115
    %v117 = vpop.f32.mrf.mxu0
    %v118 = vadd.f32 %v94, %v117
    %119 = vdwg.mxu0
    %120 = vmatpush.msra.mxu0 0.0
    %121 = vmatpush.msra.mxu0 0.0
    %122 = vmatpush.msra.mxu0 0.0
    %123 = vmatpush.msra.mxu0 0.0
    %124 = vmatpush.msra.mxu0 0.0
    %125 = vmatpush.msra.mxu0 0.0
    %126 = vmatpush.msra.mxu0 0.0
    %127 = vmatpush.msra.mxu0 0.0
    %128 = vmatpush.msra.mxu0 0.0
    %129 = vmatpush.msra.mxu0 0.0
    %130 = vmatpush.msra.mxu0 0.0
    %131 = vmatpush.msra.mxu0 0.0
    %132 = vmatpush.msra.mxu0 0.0
    %133 = vmatpush.msra.mxu0 0.0
    %134 = vmatpush.msra.mxu0 0.0
    %v135 = vand.u32 %v42, 4294901760
    %136 = vmatpush.msra.mxu0 %v135
    %v137 = vand.u32 %v38, 4294901760
    %v138 = vsub.f32 %v38, %v137
    %v139 = vand.u32 %v138, 4294901760
    %140 = vmatmul.f32.gmra.mxu0 %v139
    %v141 = vpop.f32.mrf.mxu0
    %v142 = vadd.f32 %v118, %v141
    %143 = vdwg.mxu0
    %144 = vmatpush.msra.mxu0 0.0
    %145 = vmatpush.msra.mxu0 0.0
    %146 = vmatpush.msra.mxu0 0.0
    %147 = vmatpush.msra.mxu0 0.0
    %148 = vmatpush.msra.mxu0 0.0
    %149 = vmatpush.msra.mxu0 0.0
    %150 = vmatpush.msra.mxu0 0.0
    %151 = vmatpush.msra.mxu0 0.0
    %152 = vmatpush.msra.mxu0 0.0
    %153 = vmatpush.msra.mxu0 0.0
    %154 = vmatpush.msra.mxu0 0.0
    %155 = vmatpush.msra.mxu0 0.0
    %156 = vmatpush.msra.mxu0 0.0
    %157 = vmatpush.msra.mxu0 0.0
    %158 = vmatpush.msra.mxu0 0.0
    %v159 = vand.u32 %v42, 4294901760
    %v160 = vsub.f32 %v42, %v159
    %v161 = vand.u32 %v160, 4294901760
    %162 = vmatpush.msra.mxu0 %v161
    %v163 = vand.u32 %v38, 4294901760
    %164 = vmatmul.f32.gmra.mxu0 %v163
    %v165 = vpop.f32.mrf.mxu0
    %v166 = vadd.f32 %v142, %v165
    %167 = vdwg.mxu0
    %168 = vmatpush.msra.mxu0 0.0
    %169 = vmatpush.msra.mxu0 0.0
    %170 = vmatpush.msra.mxu0 0.0
    %171 = vmatpush.msra.mxu0 0.0
    %172 = vmatpush.msra.mxu0 0.0
    %173 = vmatpush.msra.mxu0 0.0
    %174 = vmatpush.msra.mxu0 0.0
    %175 = vmatpush.msra.mxu0 0.0
    %176 = vmatpush.msra.mxu0 0.0
    %177 = vmatpush.msra.mxu0 0.0
    %178 = vmatpush.msra.mxu0 0.0
    %179 = vmatpush.msra.mxu0 0.0
    %180 = vmatpush.msra.mxu0 0.0
    %181 = vmatpush.msra.mxu0 0.0
    %182 = vmatpush.msra.mxu0 0.0
    %v183 = vand.u32 %v42, 4294901760
    %184 = vmatpush.msra.mxu0 %v183
    %v185 = vand.u32 %v38, 4294901760
    %186 = vmatmul.f32.gmra.mxu0 %v185
    %v187 = vpop.f32.mrf.mxu0
    %v188 = vadd.f32 %v166, %v187
    %189 = vdwg.mxu0
    %v190 = vperm.slane %v33, 0
    %vm191 = vcmask 39936
    %v193 = vsel %vm191, %v30, 0
    %vm195 = vcmask 1044480
    %v197 = vsel %vm195, %v188, 0
    %199 = vmatpush.msra.mxu0 0.0
    %200 = vmatpush.msra.mxu0 0.0
    %201 = vmatpush.msra.mxu0 0.0
    %202 = vmatpush.msra.mxu0 0.0
    %203 = vmatpush.msra.mxu0 0.0
    %204 = vmatpush.msra.mxu0 0.0
    %205 = vmatpush.msra.mxu0 0.0
    %206 = vmatpush.msra.mxu0 0.0
    %207 = vmatpush.msra.mxu0 0.0
    %208 = vmatpush.msra.mxu0 0.0
    %209 = vmatpush.msra.mxu0 0.0
    %210 = vmatpush.msra.mxu0 0.0
    %211 = vmatpush.msra.mxu0 0.0
    %212 = vmatpush.msra.mxu0 0.0
    %213 = vmatpush.msra.mxu0 0.0
    %v214 = vand.u32 %v197, 4294901760
    %215 = vmatpush.msra.mxu0 %v214
    %v216 = vand.u32 %v193, 4294901760
    %v217 = vsub.f32 %v193, %v216
    %v218 = vand.u32 %v217, 4294901760
    %v219 = vsub.f32 %v217, %v218
    %v220 = vand.u32 %v219, 4294901760
    %221 = vmatmul.f32.gmra.mxu0 %v220
    %v222 = vpop.f32.mrf.mxu0
    %v223 = vadd.f32 %v190, %v222
    %224 = vdwg.mxu0
    %225 = vmatpush.msra.mxu0 0.0
    %226 = vmatpush.msra.mxu0 0.0
    %227 = vmatpush.msra.mxu0 0.0
    %228 = vmatpush.msra.mxu0 0.0
    %229 = vmatpush.msra.mxu0 0.0
    %230 = vmatpush.msra.mxu0 0.0
    %231 = vmatpush.msra.mxu0 0.0
    %232 = vmatpush.msra.mxu0 0.0
    %233 = vmatpush.msra.mxu0 0.0
    %234 = vmatpush.msra.mxu0 0.0
    %235 = vmatpush.msra.mxu0 0.0
    %236 = vmatpush.msra.mxu0 0.0
    %237 = vmatpush.msra.mxu0 0.0
    %238 = vmatpush.msra.mxu0 0.0
    %239 = vmatpush.msra.mxu0 0.0
    %v240 = vand.u32 %v197, 4294901760
    %v241 = vsub.f32 %v197, %v240
    %v242 = vand.u32 %v241, 4294901760
    %v243 = vsub.f32 %v241, %v242
    %v244 = vand.u32 %v243, 4294901760
    %245 = vmatpush.msra.mxu0 %v244
    %v246 = vand.u32 %v193, 4294901760
    %247 = vmatmul.f32.gmra.mxu0 %v246
    %v248 = vpop.f32.mrf.mxu0
    %v249 = vadd.f32 %v223, %v248
    %250 = vdwg.mxu0
    %251 = vmatpush.msra.mxu0 0.0
    %252 = vmatpush.msra.mxu0 0.0
    %253 = vmatpush.msra.mxu0 0.0
    %254 = vmatpush.msra.mxu0 0.0
    %255 = vmatpush.msra.mxu0 0.0
    %256 = vmatpush.msra.mxu0 0.0
    %257 = vmatpush.msra.mxu0 0.0
    %258 = vmatpush.msra.mxu0 0.0
    %259 = vmatpush.msra.mxu0 0.0
    %260 = vmatpush.msra.mxu0 0.0
    %261 = vmatpush.msra.mxu0 0.0
    %262 = vmatpush.msra.mxu0 0.0
    %263 = vmatpush.msra.mxu0 0.0
    %264 = vmatpush.msra.mxu0 0.0
    %265 = vmatpush.msra.mxu0 0.0
    %v266 = vand.u32 %v197, 4294901760
    %v267 = vsub.f32 %v197, %v266
    %268 = vmatpush.msra.mxu0 %v267
    %v269 = vand.u32 %v193, 4294901760
    %v270 = vsub.f32 %v193, %v269
    %271 = vmatmul.f32.gmra.mxu0 %v270
    %v272 = vpop.f32.mrf.mxu0
    %v273 = vadd.f32 %v249, %v272
    %274 = vdwg.mxu0
    %275 = vmatpush.msra.mxu0 0.0
    %276 = vmatpush.msra.mxu0 0.0
    %277 = vmatpush.msra.mxu0 0.0
    %278 = vmatpush.msra.mxu0 0.0
    %279 = vmatpush.msra.mxu0 0.0
    %280 = vmatpush.msra.mxu0 0.0
    %281 = vmatpush.msra.mxu0 0.0
    %282 = vmatpush.msra.mxu0 0.0
    %283 = vmatpush.msra.mxu0 0.0
    %284 = vmatpush.msra.mxu0 0.0
    %285 = vmatpush.msra.mxu0 0.0
    %286 = vmatpush.msra.mxu0 0.0
    %287 = vmatpush.msra.mxu0 0.0
    %288 = vmatpush.msra.mxu0 0.0
    %289 = vmatpush.msra.mxu0 0.0
    %v290 = vand.u32 %v197, 4294901760
    %291 = vmatpush.msra.mxu0 %v290
    %v292 = vand.u32 %v193, 4294901760
    %v293 = vsub.f32 %v193, %v292
    %v294 = vand.u32 %v293, 4294901760
    %295 = vmatmul.f32.gmra.mxu0 %v294
    %v296 = vpop.f32.mrf.mxu0
    %v297 = vadd.f32 %v273, %v296
    %298 = vdwg.mxu0
    %299 = vmatpush.msra.mxu0 0.0
    %300 = vmatpush.msra.mxu0 0.0
    %301 = vmatpush.msra.mxu0 0.0
    %302 = vmatpush.msra.mxu0 0.0
    %303 = vmatpush.msra.mxu0 0.0
    %304 = vmatpush.msra.mxu0 0.0
    %305 = vmatpush.msra.mxu0 0.0
    %306 = vmatpush.msra.mxu0 0.0
    %307 = vmatpush.msra.mxu0 0.0
    %308 = vmatpush.msra.mxu0 0.0
    %309 = vmatpush.msra.mxu0 0.0
    %310 = vmatpush.msra.mxu0 0.0
    %311 = vmatpush.msra.mxu0 0.0
    %312 = vmatpush.msra.mxu0 0.0
    %313 = vmatpush.msra.mxu0 0.0
    %v314 = vand.u32 %v197, 4294901760
    %v315 = vsub.f32 %v197, %v314
    %v316 = vand.u32 %v315, 4294901760
    %317 = vmatpush.msra.mxu0 %v316
    %v318 = vand.u32 %v193, 4294901760
    %319 = vmatmul.f32.gmra.mxu0 %v318
    %v320 = vpop.f32.mrf.mxu0
    %v321 = vadd.f32 %v297, %v320
    %322 = vdwg.mxu0
    %323 = vmatpush.msra.mxu0 0.0
    %324 = vmatpush.msra.mxu0 0.0
    %325 = vmatpush.msra.mxu0 0.0
    %326 = vmatpush.msra.mxu0 0.0
    %327 = vmatpush.msra.mxu0 0.0
    %328 = vmatpush.msra.mxu0 0.0
    %329 = vmatpush.msra.mxu0 0.0
    %330 = vmatpush.msra.mxu0 0.0
    %331 = vmatpush.msra.mxu0 0.0
    %332 = vmatpush.msra.mxu0 0.0
    %333 = vmatpush.msra.mxu0 0.0
    %334 = vmatpush.msra.mxu0 0.0
    %335 = vmatpush.msra.mxu0 0.0
    %336 = vmatpush.msra.mxu0 0.0
    %337 = vmatpush.msra.mxu0 0.0
    %v338 = vand.u32 %v197, 4294901760
    %339 = vmatpush.msra.mxu0 %v338
    %v340 = vand.u32 %v193, 4294901760
    %341 = vmatmul.f32.gmra.mxu0 %v340
    %v342 = vpop.f32.mrf.mxu0
    %v343 = vadd.f32 %v321, %v342
    %344 = vdwg.mxu0
    %v345 = vmax.f32 %v343, 0.0
    %vm346 = vcmask 64512
    %v348 = vsel %vm346, %v345, 0
    %350 = vmatpush.msra.mxu0 0.0
    %351 = vmatpush.msra.mxu0 0.0
    %352 = vmatpush.msra.mxu0 0.0
    %353 = vmatpush.msra.mxu0 0.0
    %354 = vmatpush.msra.mxu0 0.0
    %355 = vmatpush.msra.mxu0 0.0
    %356 = vmatpush.msra.mxu0 0.0
    %357 = vmatpush.msra.mxu0 0.0
    %358 = vmatpush.msra.mxu0 0.0
    %359 = vmatpush.msra.mxu0 0.0
    %360 = vmatpush.msra.mxu0 0.0
    %361 = vmatpush.msra.mxu0 0.0
    %362 = vmatpush.msra.mxu0 0.0
    %363 = vmatpush.msra.mxu0 0.0
    %364 = vmatpush.msra.mxu0 0.0
    %v365 = vand.u32 %v32, 4294901760
    %366 = vmatpush.msra.mxu0 %v365
    %v367 = vand.u32 %v348, 4294901760
    %v368 = vsub.f32 %v348, %v367
    %v369 = vand.u32 %v368, 4294901760
    %v370 = vsub.f32 %v368, %v369
    %v371 = vand.u32 %v370, 4294901760
    %372 = vmatmul.f32.gmra.mxu0 %v371
    %v373 = vpop.f32.mrf.mxu0
    %v374 = vadd.f32 0.0, %v373
    %375 = vdwg.mxu0
    %376 = vmatpush.msra.mxu0 0.0
    %377 = vmatpush.msra.mxu0 0.0
    %378 = vmatpush.msra.mxu0 0.0
    %379 = vmatpush.msra.mxu0 0.0
    %380 = vmatpush.msra.mxu0 0.0
    %381 = vmatpush.msra.mxu0 0.0
    %382 = vmatpush.msra.mxu0 0.0
    %383 = vmatpush.msra.mxu0 0.0
    %384 = vmatpush.msra.mxu0 0.0
    %385 = vmatpush.msra.mxu0 0.0
    %386 = vmatpush.msra.mxu0 0.0
    %387 = vmatpush.msra.mxu0 0.0
    %388 = vmatpush.msra.mxu0 0.0
    %389 = vmatpush.msra.mxu0 0.0
    %390 = vmatpush.msra.mxu0 0.0
    %v391 = vand.u32 %v32, 4294901760
    %v392 = vsub.f32 %v32, %v391
    %v393 = vand.u32 %v392, 4294901760
    %v394 = vsub.f32 %v392, %v393
    %v395 = vand.u32 %v394, 4294901760
    %396 = vmatpush.msra.mxu0 %v395
    %v397 = vand.u32 %v348, 4294901760
    %398 = vmatmul.f32.gmra.mxu0 %v397
    %v399 = vpop.f32.mrf.mxu0
    %v400 = vadd.f32 %v374, %v399
    %401 = vdwg.mxu0
    %402 = vmatpush.msra.mxu0 0.0
    %403 = vmatpush.msra.mxu0 0.0
    %404 = vmatpush.msra.mxu0 0.0
    %405 = vmatpush.msra.mxu0 0.0
    %406 = vmatpush.msra.mxu0 0.0
    %407 = vmatpush.msra.mxu0 0.0
    %408 = vmatpush.msra.mxu0 0.0
    %409 = vmatpush.msra.mxu0 0.0
    %410 = vmatpush.msra.mxu0 0.0
    %411 = vmatpush.msra.mxu0 0.0
    %412 = vmatpush.msra.mxu0 0.0
    %413 = vmatpush.msra.mxu0 0.0
    %414 = vmatpush.msra.mxu0 0.0
    %415 = vmatpush.msra.mxu0 0.0
    %416 = vmatpush.msra.mxu0 0.0
    %v417 = vand.u32 %v32, 4294901760
    %v418 = vsub.f32 %v32, %v417
    %419 = vmatpush.msra.mxu0 %v418
    %v420 = vand.u32 %v348, 4294901760
    %v421 = vsub.f32 %v348, %v420
    %422 = vmatmul.f32.gmra.mxu0 %v421
    %v423 = vpop.f32.mrf.mxu0
    %v424 = vadd.f32 %v400, %v423
    %425 = vdwg.mxu0
    %426 = vmatpush.msra.mxu0 0.0
    %427 = vmatpush.msra.mxu0 0.0
    %428 = vmatpush.msra.mxu0 0.0
    %429 = vmatpush.msra.mxu0 0.0
    %430 = vmatpush.msra.mxu0 0.0
    %431 = vmatpush.msra.mxu0 0.0
    %432 = vmatpush.msra.mxu0 0.0
    %433 = vmatpush.msra.mxu0 0.0
    %434 = vmatpush.msra.mxu0 0.0
    %435 = vmatpush.msra.mxu0 0.0
    %436 = vmatpush.msra.mxu0 0.0
    %437 = vmatpush.msra.mxu0 0.0
    %438 = vmatpush.msra.mxu0 0.0
    %439 = vmatpush.msra.mxu0 0.0
    %440 = vmatpush.msra.mxu0 0.0
    %v441 = vand.u32 %v32, 4294901760
    %442 = vmatpush.msra.mxu0 %v441
    %v443 = vand.u32 %v348, 4294901760
    %v444 = vsub.f32 %v348, %v443
    %v445 = vand.u32 %v444, 4294901760
    %446 = vmatmul.f32.gmra.mxu0 %v445
    %v447 = vpop.f32.mrf.mxu0
    %v448 = vadd.f32 %v424, %v447
    %449 = vdwg.mxu0
    %450 = vmatpush.msra.mxu0 0.0
    %451 = vmatpush.msra.mxu0 0.0
    %452 = vmatpush.msra.mxu0 0.0
    %453 = vmatpush.msra.mxu0 0.0
    %454 = vmatpush.msra.mxu0 0.0
    %455 = vmatpush.msra.mxu0 0.0
    %456 = vmatpush.msra.mxu0 0.0
    %457 = vmatpush.msra.mxu0 0.0
    %458 = vmatpush.msra.mxu0 0.0
    %459 = vmatpush.msra.mxu0 0.0
    %460 = vmatpush.msra.mxu0 0.0
    %461 = vmatpush.msra.mxu0 0.0
    %462 = vmatpush.msra.mxu0 0.0
    %463 = vmatpush.msra.mxu0 0.0
    %464 = vmatpush.msra.mxu0 0.0
    %v465 = vand.u32 %v32, 4294901760
    %v466 = vsub.f32 %v32, %v465
    %v467 = vand.u32 %v466, 4294901760
    %468 = vmatpush.msra.mxu0 %v467
    %v469 = vand.u32 %v348, 4294901760
    %470 = vmatmul.f32.gmra.mxu0 %v469
    %v471 = vpop.f32.mrf.mxu0
    %v472 = vadd.f32 %v448, %v471
    %473 = vdwg.mxu0
    %474 = vmatpush.msra.mxu0 0.0
    %475 = vmatpush.msra.mxu0 0.0
    %476 = vmatpush.msra.mxu0 0.0
    %477 = vmatpush.msra.mxu0 0.0
    %478 = vmatpush.msra.mxu0 0.0
    %479 = vmatpush.msra.mxu0 0.0
    %480 = vmatpush.msra.mxu0 0.0
    %481 = vmatpush.msra.mxu0 0.0
    %482 = vmatpush.msra.mxu0 0.0
    %483 = vmatpush.msra.mxu0 0.0
    %484 = vmatpush.msra.mxu0 0.0
    %485 = vmatpush.msra.mxu0 0.0
    %486 = vmatpush.msra.mxu0 0.0
    %487 = vmatpush.msra.mxu0 0.0
    %488 = vmatpush.msra.mxu0 0.0
    %v489 = vand.u32 %v32, 4294901760
    %490 = vmatpush.msra.mxu0 %v489
    %v491 = vand.u32 %v348, 4294901760
    %492 = vmatmul.f32.gmra.mxu0 %v491
    %v493 = vpop.f32.mrf.mxu0
    %v494 = vadd.f32 %v472, %v493
    %495 = vdwg.mxu0
    %v496 = vperm.slane %v34, 0
    %v498 = vsel %vm195, %v494, 0
    %500 = vmatpush.msra.mxu0 0.0
    %501 = vmatpush.msra.mxu0 0.0
    %502 = vmatpush.msra.mxu0 0.0
    %503 = vmatpush.msra.mxu0 0.0
    %504 = vmatpush.msra.mxu0 0.0
    %505 = vmatpush.msra.mxu0 0.0
    %506 = vmatpush.msra.mxu0 0.0
    %507 = vmatpush.msra.mxu0 0.0
    %508 = vmatpush.msra.mxu0 0.0
    %509 = vmatpush.msra.mxu0 0.0
    %510 = vmatpush.msra.mxu0 0.0
    %511 = vmatpush.msra.mxu0 0.0
    %512 = vmatpush.msra.mxu0 0.0
    %513 = vmatpush.msra.mxu0 0.0
    %514 = vmatpush.msra.mxu0 0.0
    %v515 = vand.u32 %v498, 4294901760
    %516 = vmatpush.msra.mxu0 %v515
    %v517 = vand.u32 %v193, 4294901760
    %v518 = vsub.f32 %v193, %v517
    %v519 = vand.u32 %v518, 4294901760
    %v520 = vsub.f32 %v518, %v519
    %v521 = vand.u32 %v520, 4294901760
    %522 = vmatmul.f32.gmra.mxu0 %v521
    %v523 = vpop.f32.mrf.mxu0
    %v524 = vadd.f32 %v496, %v523
    %525 = vdwg.mxu0
    %526 = vmatpush.msra.mxu0 0.0
    %527 = vmatpush.msra.mxu0 0.0
    %528 = vmatpush.msra.mxu0 0.0
    %529 = vmatpush.msra.mxu0 0.0
    %530 = vmatpush.msra.mxu0 0.0
    %531 = vmatpush.msra.mxu0 0.0
    %532 = vmatpush.msra.mxu0 0.0
    %533 = vmatpush.msra.mxu0 0.0
    %534 = vmatpush.msra.mxu0 0.0
    %535 = vmatpush.msra.mxu0 0.0
    %536 = vmatpush.msra.mxu0 0.0
    %537 = vmatpush.msra.mxu0 0.0
    %538 = vmatpush.msra.mxu0 0.0
    %539 = vmatpush.msra.mxu0 0.0
    %540 = vmatpush.msra.mxu0 0.0
    %v541 = vand.u32 %v498, 4294901760
    %v542 = vsub.f32 %v498, %v541
    %v543 = vand.u32 %v542, 4294901760
    %v544 = vsub.f32 %v542, %v543
    %v545 = vand.u32 %v544, 4294901760
    %546 = vmatpush.msra.mxu0 %v545
    %v547 = vand.u32 %v193, 4294901760
    %548 = vmatmul.f32.gmra.mxu0 %v547
    %v549 = vpop.f32.mrf.mxu0
    %v550 = vadd.f32 %v524, %v549
    %551 = vdwg.mxu0
    %552 = vmatpush.msra.mxu0 0.0
    %553 = vmatpush.msra.mxu0 0.0
    %554 = vmatpush.msra.mxu0 0.0
    %555 = vmatpush.msra.mxu0 0.0
    %556 = vmatpush.msra.mxu0 0.0
    %557 = vmatpush.msra.mxu0 0.0
    %558 = vmatpush.msra.mxu0 0.0
    %559 = vmatpush.msra.mxu0 0.0
    %560 = vmatpush.msra.mxu0 0.0
    %561 = vmatpush.msra.mxu0 0.0
    %562 = vmatpush.msra.mxu0 0.0
    %563 = vmatpush.msra.mxu0 0.0
    %564 = vmatpush.msra.mxu0 0.0
    %565 = vmatpush.msra.mxu0 0.0
    %566 = vmatpush.msra.mxu0 0.0
    %v567 = vand.u32 %v498, 4294901760
    %v568 = vsub.f32 %v498, %v567
    %569 = vmatpush.msra.mxu0 %v568
    %v570 = vand.u32 %v193, 4294901760
    %v571 = vsub.f32 %v193, %v570
    %572 = vmatmul.f32.gmra.mxu0 %v571
    %v573 = vpop.f32.mrf.mxu0
    %v574 = vadd.f32 %v550, %v573
    %575 = vdwg.mxu0
    %576 = vmatpush.msra.mxu0 0.0
    %577 = vmatpush.msra.mxu0 0.0
    %578 = vmatpush.msra.mxu0 0.0
    %579 = vmatpush.msra.mxu0 0.0
    %580 = vmatpush.msra.mxu0 0.0
    %581 = vmatpush.msra.mxu0 0.0
    %582 = vmatpush.msra.mxu0 0.0
    %583 = vmatpush.msra.mxu0 0.0
    %584 = vmatpush.msra.mxu0 0.0
    %585 = vmatpush.msra.mxu0 0.0
    %586 = vmatpush.msra.mxu0 0.0
    %587 = vmatpush.msra.mxu0 0.0
    %588 = vmatpush.msra.mxu0 0.0
    %589 = vmatpush.msra.mxu0 0.0
    %590 = vmatpush.msra.mxu0 0.0
    %v591 = vand.u32 %v498, 4294901760
    %592 = vmatpush.msra.mxu0 %v591
    %v593 = vand.u32 %v193, 4294901760
    %v594 = vsub.f32 %v193, %v593
    %v595 = vand.u32 %v594, 4294901760
    %596 = vmatmul.f32.gmra.mxu0 %v595
    %v597 = vpop.f32.mrf.mxu0
    %v598 = vadd.f32 %v574, %v597
    %599 = vdwg.mxu0
    %600 = vmatpush.msra.mxu0 0.0
    %601 = vmatpush.msra.mxu0 0.0
    %602 = vmatpush.msra.mxu0 0.0
    %603 = vmatpush.msra.mxu0 0.0
    %604 = vmatpush.msra.mxu0 0.0
    %605 = vmatpush.msra.mxu0 0.0
    %606 = vmatpush.msra.mxu0 0.0
    %607 = vmatpush.msra.mxu0 0.0
    %608 = vmatpush.msra.mxu0 0.0
    %609 = vmatpush.msra.mxu0 0.0
    %610 = vmatpush.msra.mxu0 0.0
    %611 = vmatpush.msra.mxu0 0.0
    %612 = vmatpush.msra.mxu0 0.0
    %613 = vmatpush.msra.mxu0 0.0
    %614 = vmatpush.msra.mxu0 0.0
    %v615 = vand.u32 %v498, 4294901760
    %v616 = vsub.f32 %v498, %v615
    %v617 = vand.u32 %v616, 4294901760
    %618 = vmatpush.msra.mxu0 %v617
    %v619 = vand.u32 %v193, 4294901760
    %620 = vmatmul.f32.gmra.mxu0 %v619
    %v621 = vpop.f32.mrf.mxu0
    %v622 = vadd.f32 %v598, %v621
    %623 = vdwg.mxu0
    %624 = vmatpush.msra.mxu0 0.0
    %625 = vmatpush.msra.mxu0 0.0
    %626 = vmatpush.msra.mxu0 0.0
    %627 = vmatpush.msra.mxu0 0.0
    %628 = vmatpush.msra.mxu0 0.0
    %629 = vmatpush.msra.mxu0 0.0
    %630 = vmatpush.msra.mxu0 0.0
    %631 = vmatpush.msra.mxu0 0.0
    %632 = vmatpush.msra.mxu0 0.0
    %633 = vmatpush.msra.mxu0 0.0
    %634 = vmatpush.msra.mxu0 0.0
    %635 = vmatpush.msra.mxu0 0.0
    %636 = vmatpush.msra.mxu0 0.0
    %637 = vmatpush.msra.mxu0 0.0
    %638 = vmatpush.msra.mxu0 0.0
    %v639 = vand.u32 %v498, 4294901760
    %640 = vmatpush.msra.mxu0 %v639
    %v641 = vand.u32 %v193, 4294901760
    %642 = vmatmul.f32.gmra.mxu0 %v641
    %v643 = vpop.f32.mrf.mxu0
    %v644 = vadd.f32 %v622, %v643
    %645 = vdwg.mxu0
    %646 = vst [vmem:[%s3] sm:$0x1f] %v644
    // Predicated region
    $region18: #{gnn_forward.1} parent=1 // pred_check
      _
    $region19: #{gnn_forward.1} parent=1 // pred_check_branch
      %648 = sbr.rel (0) target = $region21
    $region20: #{gnn_forward.1} parent=1 // pred_region
      _
    $region21: #{gnn_forward.1} parent=1 // pred_fallthru
      _
    // Predicated region
    $region22: #{gnn_forward.1} parent=1 // pred_check
      _
    $region23: #{gnn_forward.1} parent=1 // pred_check_branch
      %650 = sbr.rel (0) target = $region25
    $region24: #{gnn_forward.1} parent=1 // pred_region
      _
    $region25: #{gnn_forward.1} parent=1 // pred_fallthru
      _
    %651 = vsyncpa [#allocation3], 1

</llo_original>
